<compile_context>
chip_gen: v7x
topology: tpu7x:2x2x1
jax: 0.10.0
libtpu: 0.0.40
codegen_flags: <defaults>
</compile_context>

<pallas_src>
import math

import jax
import jax.numpy as jnp
from jax.experimental import pallas as pl
from jax.experimental.pallas import tpu as pltpu


_LANE = 128
_SUBLANE = 8
# Per-step VMEM budget for the double-buffered blocks; conservative enough for
# v7x's 64 MiB physical VMEM, and fine on v5e / v6e.
_VMEM_BLOCK_BUDGET = 32 * 1024 * 1024
_VMEM_LIMIT_BYTES = 40 * 1024 * 1024


def _linear_comb_kernel(w_ref, x_ref, o_ref):
    # w_ref: SMEM (n,) f32 scalars (scalar-prefetched weights)
    # x_ref: VMEM (n, TR, 128) input slab
    # o_ref: VMEM (TR, 128) output slab
    n = x_ref.shape[0]
    # Unrolled accumulate over the small static combination axis: keeps only
    # ~2 slabs of vregs live and accumulates in f32 regardless of input dtype.
    acc = x_ref[0].astype(jnp.float32) * w_ref[0]
    for i in range(1, n):
        acc = acc + x_ref[i].astype(jnp.float32) * w_ref[i]
    o_ref[...] = acc.astype(o_ref.dtype)


def _round_up(v: int, m: int) -> int:
    return ((v + m - 1) // m) * m


def linear_comb(x: jax.Array, weight: jax.Array) -> jax.Array:
    """(x * weight_broadcast).sum(axis=1).

    x: [B, n, *spatial]; weight: [n] or [n, 1, ..., 1]; returns [B, *spatial].
    """
    B, n = int(x.shape[0]), int(x.shape[1])
    spatial = x.shape[2:]
    S = int(math.prod(spatial)) if len(spatial) else 1

    w = weight.reshape(n).astype(jnp.float32)

    out_dtype = x.dtype
    in_itemsize = x.dtype.itemsize
    out_itemsize = jnp.dtype(out_dtype).itemsize

    # ---- Tile sizing: lane-dense (TR, 128) slabs of the flattened spatial dim.
    R = pl.cdiv(S, _LANE)  # rows of 128 lanes
    bytes_per_row = (2 * n * in_itemsize + 2 * out_itemsize) * _LANE  # 2x: double buffered
    max_tr = max(_SUBLANE, (_VMEM_BLOCK_BUDGET // bytes_per_row) // _SUBLANE * _SUBLANE)
    tr_target = min(512, max_tr)  # ~512x128 elements per input slab
    num_chunks = pl.cdiv(R, tr_target)
    TR = _round_up(pl.cdiv(R, num_chunks), _SUBLANE)
    R_pad = num_chunks * TR
    S_pad = R_pad * _LANE

    # ---- Free metadata reshape to [B, n, S]; cheap zero-pad to tiled extent.
    x_flat = x.reshape(B, n, S)
    if S_pad != S:
        x_flat = jnp.pad(x_flat, ((0, 0), (0, 0), (0, S_pad - S)))
    x_flat = x_flat.reshape(B, n, R_pad, _LANE)

    cost = pl.CostEstimate(
        flops=2 * B * n * S_pad,
        transcendentals=0,
        bytes_accessed=B * n * S_pad * in_itemsize + B * S_pad * out_itemsize + n * 4,
    )

    out = pl.pallas_call(
        _linear_comb_kernel,
        out_shape=jax.ShapeDtypeStruct((B, R_pad, _LANE), out_dtype),
        grid_spec=pltpu.PrefetchScalarGridSpec(
            num_scalar_prefetch=1,  # weights land in SMEM, read as scalars
            grid=(B, num_chunks),
            in_specs=[
                pl.BlockSpec(
                    (pl.Squeezed(), n, TR, _LANE),
                    lambda b, c, w_ref: (b, 0, c, 0),
                ),
            ],
            out_specs=pl.BlockSpec(
                (pl.Squeezed(), TR, _LANE),
                lambda b, c, w_ref: (b, c, 0),
            ),
        ),
        compiler_params=pltpu.CompilerParams(
            dimension_semantics=("parallel", "parallel"),
            vmem_limit_bytes=_VMEM_LIMIT_BYTES,
        ),
        cost_estimate=cost,
    )(w, x_flat)

    out = out.reshape(B, S_pad)[:, :S].reshape((B, *spatial))
    return out


if __name__ == "__main__":
    # Small shapes consistent with the module: LinearComb(n=4, len=2) applied
    # to x of shape [B, n, H, W]; parameter shape [n, 1, 1].
    B, n, H, W = 2, 4, 16, 16

    key = jax.random.PRNGKey(0)
    kx, kw = jax.random.split(key)
    x = jax.random.normal(kx, (B, n, H, W), dtype=jnp.float32)
    weight = jax.random.normal(kw, (n, 1, 1), dtype=jnp.float32)  # torch.randn([n,1,1])

    out = linear_comb(x, weight)
    jax.block_until_ready(out)

    # Reference check (pure JAX): (x * linear).sum(dim=1)
    ref = jnp.sum(x * weight.reshape(1, n, 1, 1), axis=1)
    assert out.shape == (B, H, W)
    assert jnp.allclose(out, ref, atol=1e-5, rtol=1e-5)

    print("KERNEL_OK")
</pallas_src>

<mosaic_0001>
module attributes {stable_mosaic.version = 11 : i64} {
  func.func @_linear_comb_kernel(%arg0: i32, %arg1: i32, %arg2: memref<4xf32, #tpu.memory_space<smem>>, %arg3: memref<1x4x8x128xf32, #tpu.memory_space<vmem>>, %arg4: memref<1x8x128xf32, #tpu.memory_space<vmem>>) attributes {dimension_semantics = [#tpu.dimension_semantics<parallel>, #tpu.dimension_semantics<parallel>], iteration_bounds = array<i64: 2, 1>, scalar_prefetch = 1 : i64, scratch_operands = 0 : i64, tpu.core_type = #tpu.core_type<tc>, window_params = [{transform_indices = @transform_0, window_bounds = array<i64: 1, 4, 8, 128>}, {transform_indices = @transform_1, window_bounds = array<i64: 1, 8, 128>}]} {
    %c0 = arith.constant 0 : index
    %c0_0 = arith.constant 0 : index
    %c0_1 = arith.constant 0 : index
    %c0_2 = arith.constant 0 : index
    %0 = vector.load %arg3[%c0, %c0_0, %c0_1, %c0_2] : memref<1x4x8x128xf32, #tpu.memory_space<vmem>>, vector<1x1x8x128xf32>
    %1 = vector.shape_cast %0 : vector<1x1x8x128xf32> to vector<8x128xf32>
    %c0_3 = arith.constant 0 : index
    %2 = memref.load %arg2[%c0_3] : memref<4xf32, #tpu.memory_space<smem>>
    %3 = vector.broadcast %2 : f32 to vector<8x128xf32>
    %4 = arith.mulf %1, %3 : vector<8x128xf32>
    %c0_4 = arith.constant 0 : index
    %c1 = arith.constant 1 : index
    %c0_5 = arith.constant 0 : index
    %c0_6 = arith.constant 0 : index
    %5 = vector.load %arg3[%c0_4, %c1, %c0_5, %c0_6] : memref<1x4x8x128xf32, #tpu.memory_space<vmem>>, vector<1x1x8x128xf32>
    %6 = vector.shape_cast %5 : vector<1x1x8x128xf32> to vector<8x128xf32>
    %c1_7 = arith.constant 1 : index
    %7 = memref.load %arg2[%c1_7] : memref<4xf32, #tpu.memory_space<smem>>
    %8 = vector.broadcast %7 : f32 to vector<8x128xf32>
    %9 = arith.mulf %6, %8 : vector<8x128xf32>
    %10 = arith.addf %4, %9 : vector<8x128xf32>
    %c0_8 = arith.constant 0 : index
    %c2 = arith.constant 2 : index
    %c0_9 = arith.constant 0 : index
    %c0_10 = arith.constant 0 : index
    %11 = vector.load %arg3[%c0_8, %c2, %c0_9, %c0_10] : memref<1x4x8x128xf32, #tpu.memory_space<vmem>>, vector<1x1x8x128xf32>
    %12 = vector.shape_cast %11 : vector<1x1x8x128xf32> to vector<8x128xf32>
    %c2_11 = arith.constant 2 : index
    %13 = memref.load %arg2[%c2_11] : memref<4xf32, #tpu.memory_space<smem>>
    %14 = vector.broadcast %13 : f32 to vector<8x128xf32>
    %15 = arith.mulf %12, %14 : vector<8x128xf32>
    %16 = arith.addf %10, %15 : vector<8x128xf32>
    %c0_12 = arith.constant 0 : index
    %c3 = arith.constant 3 : index
    %c0_13 = arith.constant 0 : index
    %c0_14 = arith.constant 0 : index
    %17 = vector.load %arg3[%c0_12, %c3, %c0_13, %c0_14] : memref<1x4x8x128xf32, #tpu.memory_space<vmem>>, vector<1x1x8x128xf32>
    %18 = vector.shape_cast %17 : vector<1x1x8x128xf32> to vector<8x128xf32>
    %c3_15 = arith.constant 3 : index
    %19 = memref.load %arg2[%c3_15] : memref<4xf32, #tpu.memory_space<smem>>
    %20 = vector.broadcast %19 : f32 to vector<8x128xf32>
    %21 = arith.mulf %18, %20 : vector<8x128xf32>
    %22 = arith.addf %16, %21 : vector<8x128xf32>
    %c0_16 = arith.constant 0 : index
    %c0_17 = arith.constant 0 : index
    %c0_18 = arith.constant 0 : index
    %23 = vector.load %arg4[%c0_16, %c0_17, %c0_18] : memref<1x8x128xf32, #tpu.memory_space<vmem>>, vector<1x8x128xf32>
    %24 = vector.shape_cast %23 : vector<1x8x128xf32> to vector<8x128xf32>
    %25 = vector.shape_cast %22 : vector<8x128xf32> to vector<1x8x128xf32>
    tpu.vector_store %arg4[%c0_16, %c0_17, %c0_18], %25 {strides = array<i32>} : memref<1x8x128xf32, #tpu.memory_space<vmem>>, vector<1x8x128xf32>,
    return
  }
  func.func @transform_0(%arg0: i32, %arg1: i32, %arg2: memref<4xf32, #tpu.memory_space<smem>>) -> (i32, i32, i32, i32) {
    %c0_i32 = arith.constant 0 : i32
    %c0_i32_0 = arith.constant 0 : i32
    %c0_i32_1 = arith.constant 0 : i32
    return %arg0, %c0_i32, %arg1, %c0_i32_0 : i32, i32, i32, i32
  }
  func.func @transform_1(%arg0: i32, %arg1: i32, %arg2: memref<4xf32, #tpu.memory_space<smem>>) -> (i32, i32, i32) {
    %c0_i32 = arith.constant 0 : i32
    %c0_i32_0 = arith.constant 0 : i32
    return %arg0, %arg1, %c0_i32 : i32, i32, i32
  }
}

</mosaic_0001>

<llo_original>
// kernel: tpu_custom_call.1
$region0: #{tpu_custom_call.1}
  #allocation0 [shape = 'u32[]', space=smem, size = 0x4, offset = 0x4, fixed_abs, tag = 'smem constant byte address 0x4 - core index']
  #allocation1 [shape = 'u32[144,128]{1,0:T(1,128)}', space=vmem, size = 0x12000, scoped, tag = 'internal scratch']
  #allocation2 [shape = 's32[1]{0}', space=sflag, size = 0x4, scoped, tag = 'scoped memory for tpu_custom_call.1']
  #allocation3 [shape = 'u8[512]{0}', space=smem, size = 0x200, scoped, tag = 'prefetched SMEM operand 0']
  %s0 = inlined_call_operand.hbm [shape: f32[4], index: 0, kind: input, shape index: {}]
  %s1 = inlined_call_operand.hbm [shape: f32[2,4,8,128], index: 1, kind: input, shape index: {}]
  %s2 = inlined_call_operand.hbm [shape: f32[2,8,128], index: 2, kind: output, shape index: {}]
  %s3 = sld [smem:[#allocation0]]
  $region41: #{tpu_custom_call.1} parent=0
    _
  %s5 = ssub.s32 1, %s3
  %s6 = scalar_select 0, %s5, %s3
  %8 = dma.hbm_to_smem %s0, 16, [#allocation3], [#allocation2]
  %9 = dma.done [#allocation2], 16
  %10 = sfence
  $region1: #{tpu_custom_call.1} parent=0
    #allocation4 [shape = 'u8[32768]{0}', space=vmem, size = 0x8000, scoped, tag = 'input window, operand 1']
    #allocation5 [shape = 's32[2]{0}', space=sflag, size = 0x8, scoped, tag = 'scoped memory for tpu_custom_call.1']
    #allocation6 [shape = 's32[2]{0}', space=sflag, size = 0x8, scoped, tag = 'scoped memory for tpu_custom_call.1']
    #allocation7 [shape = 'u8[8192]{0}', space=vmem, size = 0x2000, scoped, tag = 'output window, operand 0']
    %11 = vsyncpa [#allocation5], 0
    %s12 = scalar_lea.sflag [#allocation5], 1
    %13 = vsyncpa %s12, 0
    %14 = vsyncpa [#allocation6], 0
    %s15 = scalar_lea.sflag [#allocation6], 1
    %16 = vsyncpa %s15, 0
    loop: start=0, step=1, limit=4
    $region2: #{tpu_custom_call.1} parent=1 // loop_pre_header
      _
    $region3: #{tpu_custom_call.1} parent=1 // loop_header
      %s18 = sphi 0, %s22
      %p19 = scmp.ge.s32.totalorder %s18, 4
      %s25 = sphi 0, %s37
      %s26 = sphi 0, %s33
      %s27 = sphi 0, %s25
      %s28 = sphi 0, %s26
      %s29 = sphi 0, %s27
      %s30 = sphi 0, %s28
      %s42 = sphi 0, %s44
      %s45 = sphi 0, %s42
      %s46 = sphi 0, %s45
      %s62 = sphi 0, %s46
      %s70 = sphi 0, %s72
      %s73 = sphi 0, %s70
      %s74 = sphi 0, %s73
      %s90 = sphi 0, %s74
    $region4: #{tpu_custom_call.1} parent=1 // loop_header_branch
      %21 = sbr.rel (%p19) target = $region8
    $region5: #{tpu_custom_call.1} parent=1 // loop_body
      %s23 = ssub.s32 %s18, 1
      %s24 = ssub.s32 %s18, 2
      %s31 = sadd.s32 1, %s26
      %p32 = scmp.ge.s32.totalorder %s31, 1
      %s33 = scalar_select %p32, 0, %s31
      %s34 = sadd.s32 1, %s25
      %s35 = scalar_select %p32, %s34, %s25
      %p36 = scmp.ge.s32.totalorder %s35, 2
      %s37 = scalar_select %p36, 0, %s35
      %s38 = ssub.s32 %s25, %s37
      %s39 = ssub.s32 %s26, %s33
      %s40 = sor.u32 %s38, %s39
      %p41 = scmp.eq.s32.totalorder %s40, 0
      %s43 = sadd.s32 %s42, 1
      %s44 = scalar_select %p41, %s42, %s43
      %p47 = pneg %p41
      %p48 = scmp.eq.s32.totalorder %s18, 1
      %p49 = por %p47, %p48
      %p50 = scmp.ne.s32.totalorder %s42, %s45
      %p51 = scmp.eq.s32.totalorder %s18, 0
      %p52 = por %p50, %p51
      %p53 = scmp.ne.s32.totalorder %s42, %s45
      %p54 = scmp.eq.s32.totalorder %s23, 1
      %p55 = por %p53, %p54
      %p56 = scmp.ne.s32.totalorder %s45, %s46
      %p57 = scmp.eq.s32.totalorder %s23, 0
      %p58 = por %p56, %p57
      %p59 = scmp.ne.s32.totalorder %s45, %s46
      %p60 = scmp.eq.s32.totalorder %s24, 1
      %p61 = por %p59, %p60
      %p63 = scmp.ne.s32.totalorder %s46, %s62
      %p64 = scmp.eq.s32.totalorder %s24, 0
      %p65 = por %p63, %p64
      %s66 = ssub.s32 %s25, %s37
      %s67 = ssub.s32 %s26, %s33
      %s68 = sor.u32 %s66, %s67
      %p69 = scmp.eq.s32.totalorder %s68, 0
      %s71 = sadd.s32 %s70, 1
      %s72 = scalar_select %p69, %s70, %s71
      %p75 = pneg %p69
      %p76 = scmp.eq.s32.totalorder %s18, 1
      %p77 = por %p75, %p76
      %p78 = scmp.ne.s32.totalorder %s70, %s73
      %p79 = scmp.eq.s32.totalorder %s18, 0
      %p80 = por %p78, %p79
      %p81 = scmp.ne.s32.totalorder %s70, %s73
      %p82 = scmp.eq.s32.totalorder %s23, 1
      %p83 = por %p81, %p82
      %p84 = scmp.ne.s32.totalorder %s73, %s74
      %p85 = scmp.eq.s32.totalorder %s23, 0
      %p86 = por %p84, %p85
      %p87 = scmp.ne.s32.totalorder %s73, %s74
      %p88 = scmp.eq.s32.totalorder %s24, 1
      %p89 = por %p87, %p88
      %p91 = scmp.ne.s32.totalorder %s74, %s90
      %p92 = scmp.eq.s32.totalorder %s24, 0
      %p93 = por %p91, %p92
      %p94 = scmp.le.s32.totalorder 1, %s18
      %p95 = scmp.lt.s32.totalorder %s18, 3
      %p96 = pnand %p94, %p95
      %p97 = pneg %p96
      // Predicated region
      $region9: #{tpu_custom_call.1} parent=5 // pred_check
        _
      $region10: #{tpu_custom_call.1} parent=5 // pred_check_branch
        %99 = sbr.rel (%p96) target = $region12
      $region11: #{tpu_custom_call.1} parent=5 // pred_region
        %s100 = ssub.s32 %s18, 1
      $region12: #{tpu_custom_call.1} parent=5 // pred_fallthru
        _
      %p101 = scmp.lt.s32.totalorder %s18, 2
      // Predicated region
      $region13: #{tpu_custom_call.1} parent=5 // pred_check
        %p102 = pneg %p101
      $region14: #{tpu_custom_call.1} parent=5 // pred_check_branch
        %104 = sbr.rel (%p102) target = $region16
      $region15: #{tpu_custom_call.1} parent=5 // pred_region
        // Predicated region
        $region17: #{tpu_custom_call.1} parent=15 // pred_check
          %p105 = pneg %p52
        $region18: #{tpu_custom_call.1} parent=15 // pred_check_branch
          %107 = sbr.rel (%p105) target = $region20
        $region19: #{tpu_custom_call.1} parent=15 // pred_region
          %s108 = sand.u32 %s42, 1
          %s109 = scalar_lea.sflag [#allocation5], %s108
          %s110 = sand.u32 %s42, 1
          %s111 = smul.addr %s110, 32
          %s112 = scalar_lea.vmem [#allocation4], %s111
          %s114 = ssub.s32 512, 512
          %115 = vsyncadd %s109, %s114
          %s116 = smul.addr %s25, 4
          %s117 = sadd.s32 %s26, %s116
          %s118 = smul.addr %s117, 128
          %s119 = scalar_lea.hbm %s1, %s118
          %s120 = sshll.u32 %s112, 4
          %s121 = int_to_ptr.vmem [resolvable:$true] %s120
          %126 = dma.hbm_to_vmem [thread:$0]  %s119, 512, %s121, %s109, 128, 128, 8
        $region20: #{tpu_custom_call.1} parent=15 // pred_fallthru
          _
      $region16: #{tpu_custom_call.1} parent=5 // pred_fallthru
        _
      %p127 = scmp.le.s32.totalorder 1, %s18
      %p128 = scmp.lt.s32.totalorder %s18, 3
      %p129 = pnand %p127, %p128
      %p130 = pneg %p129
      // Predicated region
      $region21: #{tpu_custom_call.1} parent=5 // pred_check
        _
      $region22: #{tpu_custom_call.1} parent=5 // pred_check_branch
        %132 = sbr.rel (%p129) target = $region24
      $region23: #{tpu_custom_call.1} parent=5 // pred_region
        %s133 = ssub.s32 %s18, 1
        %s134 = sand.u32 %s45, 1
        %s135 = scalar_lea.sflag [#allocation5], %s134
        %s136 = sand.u32 %s45, 1
        %s137 = smul.addr %s136, 32
        %s138 = scalar_lea.vmem [#allocation4], %s137
        // Predicated region
        $region25: #{tpu_custom_call.1} parent=23 // pred_check
          %p139 = pneg %p58
        $region26: #{tpu_custom_call.1} parent=23 // pred_check_branch
          %141 = sbr.rel (%p139) target = $region28
        $region27: #{tpu_custom_call.1} parent=23 // pred_region
          %142 = dma.done %s135, 512
        $region28: #{tpu_custom_call.1} parent=23 // pred_fallthru
          _
        %s143 = sand.u32 %s45, 1
        %s144 = scalar_lea.sflag [#allocation5], %s143
        %s145 = sand.u32 %s45, 1
        %s146 = smul.addr %s145, 32
        %s147 = scalar_lea.vmem [#allocation4], %s146
        %p148 = pneg %p58
        %p149 = pneg %p55
        %p150 = pneg %p86
        %p151 = pneg %p83
        %s152 = sand.u32 %s73, 1
        %s153 = scalar_lea.sflag [#allocation6], %s152
        %s154 = sand.u32 %s73, 1
        %s155 = smul.addr %s154, 8
        %s156 = scalar_lea.vmem [#allocation7], %s155
        %v157 = vld [vmem:[%s138] sm:$0xff]
        %s158 = sld [smem:[#allocation3]]
        %v159 = vstv %s158
        %v160 = vmul.f32 %v157, %v159
        %s161 = scalar_lea.vmem %s138, 8 [#allocation4]
        %v162 = vld [vmem:[%s161] sm:$0xff]
        %s163 = sld [smem:[#allocation3 + $0x1]]
        %v164 = vstv %s163
        %v165 = vmul.f32 %v162, %v164
        %v166 = vadd.f32 %v160, %v165
        %s167 = scalar_lea.vmem %s138, 16 [#allocation4]
        %v168 = vld [vmem:[%s167] sm:$0xff]
        %s169 = sld [smem:[#allocation3 + $0x2]]
        %v170 = vstv %s169
        %v171 = vmul.f32 %v168, %v170
        %v172 = vadd.f32 %v166, %v171
        %s173 = scalar_lea.vmem %s138, 24 [#allocation4]
        %v174 = vld [vmem:[%s173] sm:$0xff]
        %s175 = sld [smem:[#allocation3 + $0x3]]
        %v176 = vstv %s175
        %v177 = vmul.f32 %v174, %v176
        %v178 = vadd.f32 %v172, %v177
        %179 = vst [vmem:[%s156] sm:$0xff] %v178
        %s180 = sand.u32 %s73, 1
        %s181 = scalar_lea.sflag [#allocation6], %s180
        %s182 = sand.u32 %s73, 1
        %s183 = smul.addr %s182, 8
        %s184 = scalar_lea.vmem [#allocation7], %s183
        // Predicated region
        $region29: #{tpu_custom_call.1} parent=23 // pred_check
          %p185 = pneg %p83
        $region30: #{tpu_custom_call.1} parent=23 // pred_check_branch
          %187 = sbr.rel (%p185) target = $region32
        $region31: #{tpu_custom_call.1} parent=23 // pred_region
          %s189 = ssub.s32 128, 128
          %190 = vsyncadd %s181, %s189
          %s191 = sadd.s32 %s28, %s27
          %s192 = smul.addr %s191, 128
          %s193 = scalar_lea.hbm %s2, %s192
          %s195 = sshll.u32 %s184, 4
          %s196 = int_to_ptr.vmem [resolvable:$true] %s195
          %198 = dma.vmem_to_hbm [thread:$0]  %s196, 128, %s193, %s181
        $region32: #{tpu_custom_call.1} parent=23 // pred_fallthru
          _
      $region24: #{tpu_custom_call.1} parent=5 // pred_fallthru
        _
      %p199 = scmp.le.s32.totalorder 2, %s18
      // Predicated region
      $region33: #{tpu_custom_call.1} parent=5 // pred_check
        %p200 = pneg %p199
      $region34: #{tpu_custom_call.1} parent=5 // pred_check_branch
        %202 = sbr.rel (%p200) target = $region36
      $region35: #{tpu_custom_call.1} parent=5 // pred_region
        %s203 = ssub.s32 %s18, 2
        // Predicated region
        $region37: #{tpu_custom_call.1} parent=35 // pred_check
          %p204 = pneg %p89
        $region38: #{tpu_custom_call.1} parent=35 // pred_check_branch
          %206 = sbr.rel (%p204) target = $region40
        $region39: #{tpu_custom_call.1} parent=35 // pred_region
          %s207 = sand.u32 %s74, 1
          %s208 = scalar_lea.sflag [#allocation6], %s207
          %s209 = sand.u32 %s74, 1
          %s210 = smul.addr %s209, 8
          %s211 = scalar_lea.vmem [#allocation7], %s210
          %212 = dma.done %s208, 128
        $region40: #{tpu_custom_call.1} parent=35 // pred_fallthru
          _
      $region36: #{tpu_custom_call.1} parent=5 // pred_fallthru
        _
    $region6: #{tpu_custom_call.1} parent=1 // loop_footer
      %s22 = sadd.s32 1, %s18
    $region7: #{tpu_custom_call.1} parent=1 // loop_footer_branch
      %17 = sbr.rel target = $region3
    $region8: #{tpu_custom_call.1} parent=1 // loop_exit
      _
    %213 = vsyncpa [#allocation5], 1
    %s214 = scalar_lea.sflag [#allocation5], 1
    %215 = vsyncpa %s214, 1
    %216 = vsyncpa [#allocation6], 1
    %s217 = scalar_lea.sflag [#allocation6], 1
    %218 = vsyncpa %s217, 1

</llo_original>
